<compile_context>
chip_gen: v7x
topology: tpu7x:2x2x1
jax: 0.10.0
libtpu: 0.0.40
codegen_flags: <defaults>
</compile_context>

<pallas_src>
from typing import NamedTuple

import jax
import jax.numpy as jnp
from jax.experimental import pallas as pl
from jax.experimental.pallas import tpu as pltpu


def _round_up(x, m):
    return ((x + m - 1) // m) * m


def _vmem_capacity_bytes():
    """Per-TensorCore VMEM capacity; conservative (v7x) fallback if the query fails."""
    try:
        cap = getattr(pltpu.get_tpu_info(), "vmem_capacity_bytes", None)
        if cap:
            return int(cap)
    except Exception:
        pass
    return 64 << 20


class FFNParams(NamedTuple):
    """Prepared PointWiseFeedForward parameters (see prepare_ffn_params)."""
    w1t: jax.Array      # (lane, lane) compute dtype, layout (in, out); block-diag if fold_k > 1
    b1: jax.Array       # (1, lane) float32
    w2t: jax.Array      # (lane, lane) compute dtype
    b2: jax.Array       # (1, lane) float32
    fold_k: int         # consecutive positions folded per 128-lane row (1 = no folding)
    lane_width: int     # fold_k * H


def prepare_ffn_params(w1, b1, w2, b2, *, compute_dtype=jnp.bfloat16):
    """One-time parameter prep — call at model-load time, NOT per forward call.

    * Conv1d 1x1 weights (out, in) are transposed to (in, out) so the kernel does x @ W.
    * If 128 % H == 0 (SASRec H=32/64/128), k = 128//H consecutive positions are folded
      into one 128-lane row; the weights become block-diagonal (k copies of W^T on the
      diagonal) and the biases are tiled k times.  Per-position math is unchanged.
    * Weights cast to compute_dtype (bf16 default; the kernel accumulates in f32).
      Biases stay f32.
    """
    H = w1.shape[0]
    k = 128 // H if (H < 128 and 128 % H == 0) else 1
    lane = k * H

    w1t = jnp.asarray(w1, jnp.float32).T      # (in, out)
    w2t = jnp.asarray(w2, jnp.float32).T
    b1p = jnp.asarray(b1, jnp.float32)
    b2p = jnp.asarray(b2, jnp.float32)
    if k > 1:
        eye = jnp.eye(k, dtype=jnp.float32)
        w1t = jnp.kron(eye, w1t)              # block-diagonal (lane, lane)
        w2t = jnp.kron(eye, w2t)
        b1p = jnp.tile(b1p, k)
        b2p = jnp.tile(b2p, k)

    return FFNParams(
        w1t=w1t.astype(compute_dtype),
        b1=b1p.reshape(1, lane),
        w2t=w2t.astype(compute_dtype),
        b2=b2p.reshape(1, lane),
        fold_k=k,
        lane_width=lane,
    )


def _ffn_kernel(x_ref, w1_ref, b1_ref, w2_ref, b2_ref, o_ref):
    # x_ref:  (tm, lane) tile of (batch*position) rows, input dtype
    # w1_ref: (lane, lane) W1^T (in, out) in compute dtype   (resident)
    # b1_ref: (1, lane) f32
    # w2_ref: (lane, lane) W2^T in compute dtype             (resident)
    # b2_ref: (1, lane) f32
    x = x_ref[...]
    xc = x.astype(w1_ref.dtype)                               # bf16 operands -> MXU fast path
    h = jnp.dot(xc, w1_ref[...], preferred_element_type=jnp.float32)
    h = jnp.maximum(h + b1_ref[...], 0.0)                     # bias + ReLU in f32
    # TODO(synk): dropout1/dropout2 are identity in eval mode; training-mode dropout is
    # not implemented here.
    y = jnp.dot(h.astype(w2_ref.dtype), w2_ref[...], preferred_element_type=jnp.float32)
    o_ref[...] = (y + b2_ref[...] + x.astype(jnp.float32)).astype(o_ref.dtype)   # residual


def _choose_row_tile(n_rows, tm_max):
    """Row-tile size.  Big tiles amortize the ~0.35us/step pipeline overhead and issue
    large DMAs (63%->86% of HBM roofline going 256->1024-row tiles on v6e), but once
    there is enough work we keep >= 2 grid steps so the 'parallel' axis can feed both
    v7x TensorCores and keep the x/out double buffers busy."""
    tm_max = max(8, _round_up(tm_max, 8))
    if n_rows <= max(16, tm_max // 8):
        return _round_up(n_rows, 8)                       # tiny problem: single step
    n_steps = max(2, pl.cdiv(n_rows, tm_max))
    return min(tm_max, _round_up(pl.cdiv(n_rows, n_steps), 8))


def _tile_vmem_bytes(tm, lane, w_itemsize, x_itemsize, o_itemsize):
    weights = 2 * (2 * lane * lane * w_itemsize + 2 * lane * 4)  # 2 bufs each (constant idx map)
    streams = 2 * tm * lane * (x_itemsize + o_itemsize)          # double-buffered x-in / out tiles
    interm = 3 * tm * lane * 4                                   # f32 temporaries (h, y, residual)
    return weights + streams + interm


def pointwise_feedforward(x, params: FFNParams, *, tm=1024):
    """x: (B, L, H).  params: output of prepare_ffn_params.  Returns (B, L, H) in x.dtype."""
    B, L, H = x.shape
    M = B * L
    k, lane = params.fold_k, params.lane_width
    if lane != k * H:
        raise ValueError("params were prepared for a different hidden size")

    pad_rows = (-M) % k
    if pad_rows:
        # Rare (B*L not a multiple of fold_k): costs one extra copy of x.  Typical
        # SASRec shapes take the free contiguous-reshape path below.
        xf = jnp.pad(x.reshape(M, H), ((0, pad_rows), (0, 0))).reshape(-1, lane)
    else:
        xf = x.reshape(-1, lane)   # contiguous fold of k positions per 128-lane row
    n_rows = xf.shape[0]

    # Tile selection + generation-aware VMEM budget.
    cap = _vmem_capacity_bytes()
    budget = (cap * 4) // 5        # ~20% headroom for Mosaic internal scratch
    w_it = jnp.dtype(params.w1t.dtype).itemsize
    x_it = jnp.dtype(x.dtype).itemsize
    tm_eff = _choose_row_tile(n_rows, tm)
    while tm_eff > 8 and _tile_vmem_bytes(tm_eff, lane, w_it, x_it, x_it) > budget:
        tm_eff = max(8, _round_up(tm_eff // 2, 8))
    vmem_needed = _tile_vmem_bytes(tm_eff, lane, w_it, x_it, x_it)
    vmem_limit = int(min(max(2 * vmem_needed, 32 << 20), budget))

    out = pl.pallas_call(
        _ffn_kernel,
        out_shape=jax.ShapeDtypeStruct((n_rows, lane), x.dtype),
        grid_spec=pltpu.PrefetchScalarGridSpec(
            num_scalar_prefetch=0,
            grid=(pl.cdiv(n_rows, tm_eff),),   # ragged final block: OOB writes dropped
            in_specs=[
                pl.BlockSpec((tm_eff, lane), lambda i: (i, 0)),   # x rows (streamed)
                # Constant index maps -> weights/biases stay resident in VMEM across the grid.
                # TODO(synk): pipeline_mode=pl.Buffered(1) would drop their redundant second
                # buffer; only matters for large H under v7x's 64 MiB VMEM.
                pl.BlockSpec((lane, lane), lambda i: (0, 0)),     # W1^T
                pl.BlockSpec((1, lane), lambda i: (0, 0)),        # b1
                pl.BlockSpec((lane, lane), lambda i: (0, 0)),     # W2^T
                pl.BlockSpec((1, lane), lambda i: (0, 0)),        # b2
            ],
            out_specs=pl.BlockSpec((tm_eff, lane), lambda i: (i, 0)),
        ),
        compiler_params=pltpu.CompilerParams(
            dimension_semantics=("parallel",),
            vmem_limit_bytes=vmem_limit,
        ),
    )(xf, params.w1t, params.b1, params.w2t, params.b2)

    if pad_rows:
        out = out.reshape(-1, H)[:M]
    return out.reshape(B, L, H)


def _reference(x, w1, b1, w2, b2):
    # Pure-JAX f32 reference reproducing the PyTorch forward (eval mode).
    h = jnp.maximum(jnp.einsum('blh,oh->blo', x, w1) + b1, 0.0)
    y = jnp.einsum('blh,oh->blo', h, w2) + b2
    return y + x


if __name__ == "__main__":
    B, L, H = 2, 8, 32          # batch=2, seq=8, hidden_units=32
    key = jax.random.PRNGKey(0)
    kx, k1, kb1, k2, kb2 = jax.random.split(key, 5)

    x = jax.random.normal(kx, (B, L, H), dtype=jnp.float32)
    # Conv1d(H, H, kernel_size=1) weights: (out, in, 1) -> squeeze to (out, in)
    w1 = jax.random.normal(k1, (H, H), dtype=jnp.float32) * 0.1
    b1 = jax.random.normal(kb1, (H,), dtype=jnp.float32) * 0.1
    w2 = jax.random.normal(k2, (H, H), dtype=jnp.float32) * 0.1
    b2 = jax.random.normal(kb2, (H,), dtype=jnp.float32) * 0.1

    ref = _reference(x, w1, b1, w2, b2)

    # f32 compute path: parity check against the f32 PyTorch-style reference.
    params_f32 = prepare_ffn_params(w1, b1, w2, b2, compute_dtype=jnp.float32)
    out_f32 = jax.block_until_ready(pointwise_feedforward(x, params_f32))
    assert out_f32.shape == (B, L, H)
    assert jnp.allclose(out_f32, ref, atol=5e-3, rtol=5e-3), "f32 path mismatch vs reference"

    # bf16 fast path (f32 accumulation) -> looser tolerance.
    params_bf16 = prepare_ffn_params(w1, b1, w2, b2, compute_dtype=jnp.bfloat16)
    out_bf16 = jax.block_until_ready(pointwise_feedforward(x, params_bf16))
    assert out_bf16.shape == (B, L, H)
    assert jnp.allclose(out_bf16, ref, atol=5e-2, rtol=5e-2), "bf16 path mismatch vs reference"

    print("KERNEL_OK")
</pallas_src>

<mosaic_0001>
module attributes {stable_mosaic.version = 11 : i64} {
  func.func @_ffn_kernel(%arg0: i32, %arg1: memref<8x128xf32, #tpu.memory_space<vmem>>, %arg2: memref<128x128xf32, #tpu.memory_space<vmem>>, %arg3: memref<1x128xf32, #tpu.memory_space<vmem>>, %arg4: memref<128x128xf32, #tpu.memory_space<vmem>>, %arg5: memref<1x128xf32, #tpu.memory_space<vmem>>, %arg6: memref<8x128xf32, #tpu.memory_space<vmem>>) attributes {dimension_semantics = [#tpu.dimension_semantics<parallel>], iteration_bounds = array<i64: 1>, scalar_prefetch = 0 : i64, scratch_operands = 0 : i64, tpu.core_type = #tpu.core_type<tc>, window_params = [{transform_indices = @transform_0, window_bounds = array<i64: 8, 128>}, {pipeline_mode = #tpu.pipeline_mode<synchronous>, transform_indices = @transform_1, window_bounds = array<i64: 128, 128>}, {pipeline_mode = #tpu.pipeline_mode<synchronous>, transform_indices = @transform_2, window_bounds = array<i64: 1, 128>}, {pipeline_mode = #tpu.pipeline_mode<synchronous>, transform_indices = @transform_3, window_bounds = array<i64: 128, 128>}, {pipeline_mode = #tpu.pipeline_mode<synchronous>, transform_indices = @transform_4, window_bounds = array<i64: 1, 128>}, {transform_indices = @transform_5, window_bounds = array<i64: 8, 128>}]} {
    %c0 = arith.constant 0 : index
    %c0_0 = arith.constant 0 : index
    %0 = vector.load %arg1[%c0, %c0_0] : memref<8x128xf32, #tpu.memory_space<vmem>>, vector<8x128xf32>
    %c0_1 = arith.constant 0 : index
    %c0_2 = arith.constant 0 : index
    %1 = vector.load %arg2[%c0_1, %c0_2] : memref<128x128xf32, #tpu.memory_space<vmem>>, vector<128x128xf32>
    %cst = arith.constant dense<0.000000e+00> : vector<8x128xf32>
    %2 = tpu.matmul %0, %1, %cst {dimension_numbers = #tpu.dot_dimension_numbers<[1], [0], [0], [1], [0, 0, 1, 1], [], []>} : vector<8x128xf32>, vector<128x128xf32>, vector<8x128xf32> -> vector<8x128xf32>
    %c0_3 = arith.constant 0 : index
    %c0_4 = arith.constant 0 : index
    %3 = vector.load %arg3[%c0_3, %c0_4] : memref<1x128xf32, #tpu.memory_space<vmem>>, vector<1x128xf32>
    %4 = vector.broadcast %3 : vector<1x128xf32> to vector<8x128xf32>
    %5 = arith.addf %2, %4 : vector<8x128xf32>
    %cst_5 = arith.constant 0.000000e+00 : f32
    %6 = vector.broadcast %cst_5 : f32 to vector<8x128xf32>
    %7 = arith.maximumf %5, %6 : vector<8x128xf32>
    %c0_6 = arith.constant 0 : index
    %c0_7 = arith.constant 0 : index
    %8 = vector.load %arg4[%c0_6, %c0_7] : memref<128x128xf32, #tpu.memory_space<vmem>>, vector<128x128xf32>
    %cst_8 = arith.constant dense<0.000000e+00> : vector<8x128xf32>
    %9 = tpu.matmul %7, %8, %cst_8 {dimension_numbers = #tpu.dot_dimension_numbers<[1], [0], [0], [1], [0, 0, 1, 1], [], []>} : vector<8x128xf32>, vector<128x128xf32>, vector<8x128xf32> -> vector<8x128xf32>
    %c0_9 = arith.constant 0 : index
    %c0_10 = arith.constant 0 : index
    %10 = vector.load %arg5[%c0_9, %c0_10] : memref<1x128xf32, #tpu.memory_space<vmem>>, vector<1x128xf32>
    %11 = vector.broadcast %10 : vector<1x128xf32> to vector<8x128xf32>
    %12 = arith.addf %9, %11 : vector<8x128xf32>
    %13 = arith.addf %12, %0 : vector<8x128xf32>
    %c0_11 = arith.constant 0 : index
    %c0_12 = arith.constant 0 : index
    %14 = vector.load %arg6[%c0_11, %c0_12] : memref<8x128xf32, #tpu.memory_space<vmem>>, vector<8x128xf32>
    tpu.vector_store %arg6[%c0_11, %c0_12], %13 {strides = array<i32>} : memref<8x128xf32, #tpu.memory_space<vmem>>, vector<8x128xf32>,
    return
  }
  func.func @transform_0(%arg0: i32) -> (i32, i32) {
    %c0_i32 = arith.constant 0 : i32
    %c0_i32_0 = arith.constant 0 : i32
    return %arg0, %c0_i32 : i32, i32
  }
  func.func @transform_1(%arg0: i32) -> (i32, i32) {
    %c0_i32 = arith.constant 0 : i32
    %c0_i32_0 = arith.constant 0 : i32
    %c0_i32_1 = arith.constant 0 : i32
    return %c0_i32, %c0_i32_0 : i32, i32
  }
  func.func @transform_2(%arg0: i32) -> (i32, i32) {
    %c0_i32 = arith.constant 0 : i32
    %c0_i32_0 = arith.constant 0 : i32
    %c0_i32_1 = arith.constant 0 : i32
    return %c0_i32, %c0_i32_0 : i32, i32
  }
  func.func @transform_3(%arg0: i32) -> (i32, i32) {
    %c0_i32 = arith.constant 0 : i32
    %c0_i32_0 = arith.constant 0 : i32
    %c0_i32_1 = arith.constant 0 : i32
    return %c0_i32, %c0_i32_0 : i32, i32
  }
  func.func @transform_4(%arg0: i32) -> (i32, i32) {
    %c0_i32 = arith.constant 0 : i32
    %c0_i32_0 = arith.constant 0 : i32
    %c0_i32_1 = arith.constant 0 : i32
    return %c0_i32, %c0_i32_0 : i32, i32
  }
  func.func @transform_5(%arg0: i32) -> (i32, i32) {
    %c0_i32 = arith.constant 0 : i32
    %c0_i32_0 = arith.constant 0 : i32
    return %arg0, %c0_i32 : i32, i32
  }
}

</mosaic_0001>

<llo_original>
// kernel: tpu_custom_call.1
$region0: #{tpu_custom_call.1}
  #allocation0 [shape = 'u32[]', space=smem, size = 0x4, offset = 0x4, fixed_abs, tag = 'smem constant byte address 0x4 - core index']
  #allocation1 [shape = 'u32[144,128]{1,0:T(1,128)}', space=vmem, size = 0x12000, scoped, tag = 'internal scratch']
  %s0 = inlined_call_operand.hbm [shape: f32[4,128], index: 0, kind: input, shape index: {}]
  %s1 = inlined_call_operand.hbm [shape: f32[128,128], index: 1, kind: input, shape index: {}]
  %s2 = inlined_call_operand.vmem [shape: f32[1,128], index: 2, kind: input, shape index: {}]
  %s3 = inlined_call_operand.hbm [shape: f32[128,128], index: 3, kind: input, shape index: {}]
  %s4 = inlined_call_operand.vmem [shape: f32[1,128], index: 4, kind: input, shape index: {}]
  %s5 = inlined_call_operand.hbm [shape: f32[4,128], index: 5, kind: output, shape index: {}]
  %s6 = sld [smem:[#allocation0]]
  $region42: #{tpu_custom_call.1} parent=0
    _
  %s8 = ssub.s32 1, %s6
  %s9 = scalar_select 0, %s8, %s6
  $region1: #{tpu_custom_call.1} parent=0
    #allocation2 [shape = 'u8[4096]{0}', space=vmem, size = 0x1000, scoped, tag = 'input window, operand 0, single buffered']
    #allocation3 [shape = 's32[1]{0}', space=sflag, size = 0x4, scoped, tag = 'scoped memory for tpu_custom_call.1']
    #allocation4 [shape = 's32[1]{0}', space=sflag, size = 0x4, scoped, tag = 'scoped memory for tpu_custom_call.1']
    #allocation5 [shape = 'u8[65536]{0}', space=vmem, size = 0x10000, scoped, tag = 'input window, operand 1, single buffered']
    #allocation6 [shape = 's32[1]{0}', space=sflag, size = 0x4, scoped, tag = 'scoped memory for tpu_custom_call.1']
    #allocation7 [shape = 'u8[65536]{0}', space=vmem, size = 0x10000, scoped, tag = 'input window, operand 3, single buffered']
    #allocation8 [shape = 'u8[4096]{0}', space=vmem, size = 0x1000, scoped, tag = 'output window, operand 0, single buffered']
    %10 = vsyncpa [#allocation3], 0
    %11 = vsyncpa [#allocation6], 0
    %12 = vsyncpa [#allocation4], 0
    // Predicated region
    $region2: #{tpu_custom_call.1} parent=1 // pred_check
      _
    $region3: #{tpu_custom_call.1} parent=1 // pred_check_branch
      %14 = sbr.rel (0) target = $region5
    $region4: #{tpu_custom_call.1} parent=1 // pred_region
      %s16 = ssub.s32 128, 64
      %17 = vsyncadd [#allocation3], %s16
      %s18 = sshll.u32 [#allocation2], 4
      %s19 = int_to_ptr.vmem [resolvable:$true] %s18
      %24 = dma.hbm_to_vmem [thread:$0]  %s0, 64, %s19, [#allocation3], 64, 64, 4
    $region5: #{tpu_custom_call.1} parent=1 // pred_fallthru
      _
    // Predicated region
    $region6: #{tpu_custom_call.1} parent=1 // pred_check
      _
    $region7: #{tpu_custom_call.1} parent=1 // pred_check_branch
      %26 = sbr.rel (0) target = $region9
    $region8: #{tpu_custom_call.1} parent=1 // pred_region
      %s28 = ssub.s32 2048, 2048
      %29 = vsyncadd [#allocation6], %s28
      %s30 = sshll.u32 [#allocation5], 4
      %s31 = int_to_ptr.vmem [resolvable:$true] %s30
      %36 = dma.hbm_to_vmem [thread:$0]  %s1, 2048, %s31, [#allocation6], 128, 128, 8
    $region9: #{tpu_custom_call.1} parent=1 // pred_fallthru
      _
    // Predicated region
    $region10: #{tpu_custom_call.1} parent=1 // pred_check
      _
    $region11: #{tpu_custom_call.1} parent=1 // pred_check_branch
      %38 = sbr.rel (0) target = $region13
    $region12: #{tpu_custom_call.1} parent=1 // pred_region
      _
    $region13: #{tpu_custom_call.1} parent=1 // pred_fallthru
      _
    // Predicated region
    $region14: #{tpu_custom_call.1} parent=1 // pred_check
      _
    $region15: #{tpu_custom_call.1} parent=1 // pred_check_branch
      %40 = sbr.rel (0) target = $region17
    $region16: #{tpu_custom_call.1} parent=1 // pred_region
      %s42 = ssub.s32 2048, 2048
      %43 = vsyncadd [#allocation6], %s42
      %s44 = sshll.u32 [#allocation7], 4
      %s45 = int_to_ptr.vmem [resolvable:$true] %s44
      %50 = dma.hbm_to_vmem [thread:$0]  %s3, 2048, %s45, [#allocation6], 128, 128, 8
    $region17: #{tpu_custom_call.1} parent=1 // pred_fallthru
      _
    // Predicated region
    $region18: #{tpu_custom_call.1} parent=1 // pred_check
      _
    $region19: #{tpu_custom_call.1} parent=1 // pred_check_branch
      %52 = sbr.rel (0) target = $region21
    $region20: #{tpu_custom_call.1} parent=1 // pred_region
      _
    $region21: #{tpu_custom_call.1} parent=1 // pred_fallthru
      _
    // Predicated region
    $region22: #{tpu_custom_call.1} parent=1 // pred_check
      _
    $region23: #{tpu_custom_call.1} parent=1 // pred_check_branch
      %54 = sbr.rel (0) target = $region25
    $region24: #{tpu_custom_call.1} parent=1 // pred_region
      %55 = dma.done [#allocation3], 128
    $region25: #{tpu_custom_call.1} parent=1 // pred_fallthru
      _
    // Predicated region
    $region26: #{tpu_custom_call.1} parent=1 // pred_check
      _
    $region27: #{tpu_custom_call.1} parent=1 // pred_check_branch
      %57 = sbr.rel (0) target = $region29
    $region28: #{tpu_custom_call.1} parent=1 // pred_region
      %58 = dma.done [#allocation6], 2048
    $region29: #{tpu_custom_call.1} parent=1 // pred_fallthru
      _
    // Predicated region
    $region30: #{tpu_custom_call.1} parent=1 // pred_check
      _
    $region31: #{tpu_custom_call.1} parent=1 // pred_check_branch
      %60 = sbr.rel (0) target = $region33
    $region32: #{tpu_custom_call.1} parent=1 // pred_region
      %61 = dma.done [#allocation6], 2048
    $region33: #{tpu_custom_call.1} parent=1 // pred_fallthru
      _
    %v62 = vld [vmem:[#allocation2] sm:$0xff]
    %v63 = vld [vmem:[#allocation5] sm:$0xff]
    %v64 = vld [vmem:[#allocation5 + $0x8] sm:$0xff]
    %v65 = vld [vmem:[#allocation5 + $0x10] sm:$0xff]
    %v66 = vld [vmem:[#allocation5 + $0x18] sm:$0xff]
    %v67 = vld [vmem:[#allocation5 + $0x20] sm:$0xff]
    %v68 = vld [vmem:[#allocation5 + $0x28] sm:$0xff]
    %v69 = vld [vmem:[#allocation5 + $0x30] sm:$0xff]
    %v70 = vld [vmem:[#allocation5 + $0x38] sm:$0xff]
    %v71 = vld [vmem:[#allocation5 + $0x40] sm:$0xff]
    %v72 = vld [vmem:[#allocation5 + $0x48] sm:$0xff]
    %v73 = vld [vmem:[#allocation5 + $0x50] sm:$0xff]
    %v74 = vld [vmem:[#allocation5 + $0x58] sm:$0xff]
    %v75 = vld [vmem:[#allocation5 + $0x60] sm:$0xff]
    %v76 = vld [vmem:[#allocation5 + $0x68] sm:$0xff]
    %v77 = vld [vmem:[#allocation5 + $0x70] sm:$0xff]
    %v78 = vld [vmem:[#allocation5 + $0x78] sm:$0xff]
    %v79 = vld [vmem:[%s2] sm:$0x1]
    %v81 = vlaneseq
    %v82 = vshrl.u32 %v81, 7
    %v83 = vsub.s32 0, %v82
    %v84 = vrot.slane %v79, %v83
    %86 = vmatprep.subr.mxu0 0.0
    %87 = vmatpush1.msra.mxu0 %v63
    %88 = vmatprep.subr.mxu0 0.0
    %89 = vmatpush1.msra.mxu0 %v64
    %90 = vmatprep.subr.mxu0 0.0
    %91 = vmatpush1.msra.mxu0 %v65
    %92 = vmatprep.subr.mxu0 0.0
    %93 = vmatpush1.msra.mxu0 %v66
    %94 = vmatprep.subr.mxu0 0.0
    %95 = vmatpush1.msra.mxu0 %v67
    %96 = vmatprep.subr.mxu0 0.0
    %97 = vmatpush1.msra.mxu0 %v68
    %98 = vmatprep.subr.mxu0 0.0
    %99 = vmatpush1.msra.mxu0 %v69
    %100 = vmatprep.subr.mxu0 0.0
    %101 = vmatpush1.msra.mxu0 %v70
    %102 = vmatprep.subr.mxu0 0.0
    %103 = vmatpush1.msra.mxu0 %v71
    %104 = vmatprep.subr.mxu0 0.0
    %105 = vmatpush1.msra.mxu0 %v72
    %106 = vmatprep.subr.mxu0 0.0
    %107 = vmatpush1.msra.mxu0 %v73
    %108 = vmatprep.subr.mxu0 0.0
    %109 = vmatpush1.msra.mxu0 %v74
    %110 = vmatprep.subr.mxu0 0.0
    %111 = vmatpush1.msra.mxu0 %v75
    %112 = vmatprep.subr.mxu0 0.0
    %113 = vmatpush1.msra.mxu0 %v76
    %114 = vmatprep.subr.mxu0 0.0
    %115 = vmatpush1.msra.mxu0 %v77
    %116 = vmatprep.subr.mxu0 0.0
    %117 = vmatpush1.msra.mxu0 %v78
    %118 = vmatprep.subr.mxu0 0.0
    %119 = vmatpush1.msra.mxu0 0.0
    %120 = vmatprep.subr.mxu0 0.0
    %121 = vmatpush1.msra.mxu0 0.0
    %122 = vmatprep.subr.mxu0 0.0
    %123 = vmatpush1.msra.mxu0 0.0
    %124 = vmatprep.subr.mxu0 0.0
    %125 = vmatpush1.msra.mxu0 0.0
    %126 = vmatprep.subr.mxu0 0.0
    %127 = vmatpush1.msra.mxu0 0.0
    %128 = vmatprep.subr.mxu0 0.0
    %129 = vmatpush1.msra.mxu0 0.0
    %130 = vmatprep.subr.mxu0 0.0
    %131 = vmatpush1.msra.mxu0 0.0
    %132 = vmatprep.subr.mxu0 0.0
    %133 = vmatpush1.msra.mxu0 0.0
    %134 = vmatprep.subr.mxu0 0.0
    %135 = vmatpush1.msra.mxu0 0.0
    %136 = vmatprep.subr.mxu0 0.0
    %137 = vmatpush1.msra.mxu0 0.0
    %138 = vmatprep.subr.mxu0 0.0
    %139 = vmatpush1.msra.mxu0 0.0
    %140 = vmatprep.subr.mxu0 0.0
    %141 = vmatpush1.msra.mxu0 0.0
    %142 = vmatprep.subr.mxu0 0.0
    %143 = vmatpush1.msra.mxu0 0.0
    %144 = vmatprep.subr.mxu0 0.0
    %145 = vmatpush1.msra.mxu0 0.0
    %146 = vmatprep.subr.mxu0 0.0
    %147 = vmatpush1.msra.mxu0 0.0
    %148 = vmatprep.subr.mxu0 0.0
    %149 = vmatpush1.msra.mxu0 0.0
    %150 = vmatprep.mubr.f32.mxu0 0.0
    %151 = vmatmul.mubr.f32.gmra.mrb[0].mxu0 %v62
    %v152 = vpop.f32.mrb[0].mxu0
    %v153 = vadd.f32 %v84, %v152
    %v154 = vpop.f32.mrb[0].mxu0
    %155 = vdwg.mxu0
    %v156 = vmax.f32 %v153, 0.0
    %v157 = vld [vmem:[#allocation7] sm:$0xff]
    %v158 = vld [vmem:[#allocation7 + $0x8] sm:$0xff]
    %v159 = vld [vmem:[#allocation7 + $0x10] sm:$0xff]
    %v160 = vld [vmem:[#allocation7 + $0x18] sm:$0xff]
    %v161 = vld [vmem:[#allocation7 + $0x20] sm:$0xff]
    %v162 = vld [vmem:[#allocation7 + $0x28] sm:$0xff]
    %v163 = vld [vmem:[#allocation7 + $0x30] sm:$0xff]
    %v164 = vld [vmem:[#allocation7 + $0x38] sm:$0xff]
    %v165 = vld [vmem:[#allocation7 + $0x40] sm:$0xff]
    %v166 = vld [vmem:[#allocation7 + $0x48] sm:$0xff]
    %v167 = vld [vmem:[#allocation7 + $0x50] sm:$0xff]
    %v168 = vld [vmem:[#allocation7 + $0x58] sm:$0xff]
    %v169 = vld [vmem:[#allocation7 + $0x60] sm:$0xff]
    %v170 = vld [vmem:[#allocation7 + $0x68] sm:$0xff]
    %v171 = vld [vmem:[#allocation7 + $0x70] sm:$0xff]
    %v172 = vld [vmem:[#allocation7 + $0x78] sm:$0xff]
    %v173 = vld [vmem:[%s4] sm:$0x1]
    %v175 = vlaneseq
    %v176 = vshrl.u32 %v175, 7
    %v177 = vsub.s32 0, %v176
    %v178 = vrot.slane %v173, %v177
    %180 = vmatprep.subr.mxu0 0.0
    %181 = vmatpush1.msra.mxu0 %v157
    %182 = vmatprep.subr.mxu0 0.0
    %183 = vmatpush1.msra.mxu0 %v158
    %184 = vmatprep.subr.mxu0 0.0
    %185 = vmatpush1.msra.mxu0 %v159
    %186 = vmatprep.subr.mxu0 0.0
    %187 = vmatpush1.msra.mxu0 %v160
    %188 = vmatprep.subr.mxu0 0.0
    %189 = vmatpush1.msra.mxu0 %v161
    %190 = vmatprep.subr.mxu0 0.0
    %191 = vmatpush1.msra.mxu0 %v162
    %192 = vmatprep.subr.mxu0 0.0
    %193 = vmatpush1.msra.mxu0 %v163
    %194 = vmatprep.subr.mxu0 0.0
    %195 = vmatpush1.msra.mxu0 %v164
    %196 = vmatprep.subr.mxu0 0.0
    %197 = vmatpush1.msra.mxu0 %v165
    %198 = vmatprep.subr.mxu0 0.0
    %199 = vmatpush1.msra.mxu0 %v166
    %200 = vmatprep.subr.mxu0 0.0
    %201 = vmatpush1.msra.mxu0 %v167
    %202 = vmatprep.subr.mxu0 0.0
    %203 = vmatpush1.msra.mxu0 %v168
    %204 = vmatprep.subr.mxu0 0.0
    %205 = vmatpush1.msra.mxu0 %v169
    %206 = vmatprep.subr.mxu0 0.0
    %207 = vmatpush1.msra.mxu0 %v170
    %208 = vmatprep.subr.mxu0 0.0
    %209 = vmatpush1.msra.mxu0 %v171
    %210 = vmatprep.subr.mxu0 0.0
    %211 = vmatpush1.msra.mxu0 %v172
    %212 = vmatprep.subr.mxu0 0.0
    %213 = vmatpush1.msra.mxu0 0.0
    %214 = vmatprep.subr.mxu0 0.0
    %215 = vmatpush1.msra.mxu0 0.0
    %216 = vmatprep.subr.mxu0 0.0
    %217 = vmatpush1.msra.mxu0 0.0
    %218 = vmatprep.subr.mxu0 0.0
    %219 = vmatpush1.msra.mxu0 0.0
    %220 = vmatprep.subr.mxu0 0.0
    %221 = vmatpush1.msra.mxu0 0.0
    %222 = vmatprep.subr.mxu0 0.0
    %223 = vmatpush1.msra.mxu0 0.0
    %224 = vmatprep.subr.mxu0 0.0
    %225 = vmatpush1.msra.mxu0 0.0
    %226 = vmatprep.subr.mxu0 0.0
    %227 = vmatpush1.msra.mxu0 0.0
    %228 = vmatprep.subr.mxu0 0.0
    %229 = vmatpush1.msra.mxu0 0.0
    %230 = vmatprep.subr.mxu0 0.0
    %231 = vmatpush1.msra.mxu0 0.0
    %232 = vmatprep.subr.mxu0 0.0
    %233 = vmatpush1.msra.mxu0 0.0
    %234 = vmatprep.subr.mxu0 0.0
    %235 = vmatpush1.msra.mxu0 0.0
    %236 = vmatprep.subr.mxu0 0.0
    %237 = vmatpush1.msra.mxu0 0.0
    %238 = vmatprep.subr.mxu0 0.0
    %239 = vmatpush1.msra.mxu0 0.0
    %240 = vmatprep.subr.mxu0 0.0
    %241 = vmatpush1.msra.mxu0 0.0
    %242 = vmatprep.subr.mxu0 0.0
    %243 = vmatpush1.msra.mxu0 0.0
    %244 = vmatprep.mubr.f32.mxu0 0.0
    %245 = vmatmul.mubr.f32.gmra.mrb[0].mxu0 %v156
    %v246 = vpop.f32.mrb[0].mxu0
    %v247 = vadd.f32 %v178, %v246
    %v248 = vpop.f32.mrb[0].mxu0
    %249 = vdwg.mxu0
    %v250 = vadd.f32 %v247, %v62
    %251 = vst [vmem:[#allocation8] sm:$0xff] %v250
    // Predicated region
    $region34: #{tpu_custom_call.1} parent=1 // pred_check
      _
    $region35: #{tpu_custom_call.1} parent=1 // pred_check_branch
      %253 = sbr.rel (0) target = $region37
    $region36: #{tpu_custom_call.1} parent=1 // pred_region
      %s255 = ssub.s32 128, 64
      %256 = vsyncadd [#allocation4], %s255
      %s257 = sshll.u32 [#allocation8], 4
      %s258 = int_to_ptr.vmem [resolvable:$true] %s257
      %263 = dma.vmem_to_hbm [thread:$0]  %s258, 64, %s5, [#allocation4], 64, 64, 4
    $region37: #{tpu_custom_call.1} parent=1 // pred_fallthru
      _
    // Predicated region
    $region38: #{tpu_custom_call.1} parent=1 // pred_check
      _
    $region39: #{tpu_custom_call.1} parent=1 // pred_check_branch
      %265 = sbr.rel (0) target = $region41
    $region40: #{tpu_custom_call.1} parent=1 // pred_region
      %266 = dma.done [#allocation4], 128
    $region41: #{tpu_custom_call.1} parent=1 // pred_fallthru
      _
    %267 = vsyncpa [#allocation3], 1
    %268 = vsyncpa [#allocation6], 1
    %269 = vsyncpa [#allocation4], 1

</llo_original>
